<compile_context>
chip_gen: v5e
topology: v5e:2x2
jax: 0.10.0
libtpu: 0.0.40
codegen_flags: <defaults>
</compile_context>

<pallas_src>
import functools

import jax
import jax.numpy as jnp
from jax import lax
from jax.experimental import pallas as pl
from jax.experimental.pallas import tpu as pltpu

_LANES = 128                     # vreg lane width
_SUBLANES = 8                    # f32 sublane count
_BLOCK_BYTES = 2 * 1024 * 1024   # ~2 MiB per input block (x2 double-buffered)


def _argmax_kernel(x_ref, idx_ref, max_ref,
                   run_max, run_idx, tile_max, row_tmp,
                   *, tile_rows, valid_rows_last, fill, acc_dtype):
    """One grid step: fold a (tile_rows, 128) slab into the running (max, idx)."""
    k = pl.program_id(0)
    nk = pl.num_programs(0)
    dtype = x_ref.dtype
    big = jnp.int32(2**31 - 1)

    @pl.when(k == 0)
    def _init():
        run_max[0] = jnp.asarray(fill, acc_dtype)
        run_idx[0] = jnp.int32(0)

    # ---- Hot pass: one max-reduce per tile.  The partial last tile (if any)
    # reduces only its statically-known valid rows; every other tile reduces
    # the raw block (no iota / mask / select on the hot path).
    if valid_rows_last == tile_rows:
        tile_max[0] = jnp.max(x_ref[...]).astype(acc_dtype)
    else:
        @pl.when(k == nk - 1)
        def _partial_tile():
            tile_max[0] = jnp.max(x_ref[:valid_rows_last, :]).astype(acc_dtype)

        @pl.when(k != nk - 1)
        def _full_tile():
            tile_max[0] = jnp.max(x_ref[...]).astype(acc_dtype)

    # ---- Cold pass: only when this tile STRICTLY beats the running max
    # (strict ">" keeps the earliest tile on ties => torch first-occurrence).
    # Two-stage row-then-column search keeps temporaries tiny.
    @pl.when(tile_max[0] > run_max[0])
    def _update():
        run_max[0] = tile_max[0]
        tmax = tile_max[0].astype(dtype)
        x = x_ref[...]                                            # (tile_rows, 128)

        # Stage 1: first row whose max equals the tile max.  Out-of-bounds
        # garbage rows of a partial last tile can never win: the winning value
        # lives in an earlier (valid) row and we take the minimum row index.
        row_max = jnp.max(x, axis=1, keepdims=True)               # (tile_rows, 1)
        row_ids = lax.broadcasted_iota(jnp.int32, (tile_rows, 1), 0)
        row_tmp[0] = jnp.min(jnp.where(row_max == tmax, row_ids, big))
        r = row_tmp[0]                                            # scalar (SMEM)

        # Stage 2: first column inside that single row.
        hit_row = x_ref[pl.ds(r, 1), :]                           # (1, 128)
        col_ids = lax.broadcasted_iota(jnp.int32, (1, _LANES), 1)
        base = k * (tile_rows * _LANES) + r * _LANES
        run_idx[0] = jnp.min(jnp.where(hit_row == tmax, col_ids + base, big))

    # ---- Emit the result only once, on the last grid step.
    @pl.when(k == nk - 1)
    def _emit():
        idx_ref[0, 0] = run_idx[0]
        max_ref[0, 0] = run_max[0]


def pallas_argmax(x, *, max_tile_rows=None, block_bytes=_BLOCK_BYTES):
    """Flat global argmax of `x` (any shape); int32, first occurrence on ties."""
    dtype = x.dtype
    flat = x.reshape(-1)                    # contiguous reshape: no copy
    n = flat.shape[0]

    if jnp.issubdtype(dtype, jnp.floating):
        fill = float("-inf")
        acc_dtype = jnp.float32             # exact for f32 / bf16 scalars
    else:
        fill = int(jnp.iinfo(dtype).min)
        acc_dtype = jnp.int32

    n_rows = n // _LANES
    n_main = n_rows * _LANES
    tail_len = n - n_main

    if n_rows == 0:
        # Fewer than 128 elements: not worth a kernel launch.
        return jnp.argmax(flat).astype(jnp.int32)

    # 128-aligned prefix (identity slice in the common numel % 128 == 0 case;
    # never a full padded copy of the input).
    x2d = flat[:n_main].reshape(n_rows, _LANES)

    itemsize = jnp.dtype(dtype).itemsize
    sub_mult = _SUBLANES * max(1, 4 // itemsize)     # 8 f32 / 16 bf16 / 32 i8
    if max_tile_rows is None:
        max_tile_rows = max(sub_mult, block_bytes // (_LANES * itemsize))

    if n_rows <= max_tile_rows:
        tile_rows = n_rows                  # single block == full array
    else:
        tile_rows = max(sub_mult, (max_tile_rows // sub_mult) * sub_mult)
    num_tiles = pl.cdiv(n_rows, tile_rows)
    valid_rows_last = n_rows - (num_tiles - 1) * tile_rows

    kernel = functools.partial(
        _argmax_kernel,
        tile_rows=tile_rows, valid_rows_last=valid_rows_last,
        fill=fill, acc_dtype=acc_dtype)

    idx2d, max2d = pl.pallas_call(
        kernel,
        out_shape=(jax.ShapeDtypeStruct((1, 1), jnp.int32),
                   jax.ShapeDtypeStruct((1, 1), acc_dtype)),
        grid=(num_tiles,),
        in_specs=[pl.BlockSpec((tile_rows, _LANES), lambda k: (k, 0))],
        out_specs=(pl.BlockSpec(memory_space=pltpu.SMEM),
                   pl.BlockSpec(memory_space=pltpu.SMEM)),
        scratch_shapes=[
            pltpu.SMEM((1,), acc_dtype),    # running max
            pltpu.SMEM((1,), jnp.int32),    # running argmax (flat index)
            pltpu.SMEM((1,), acc_dtype),    # current tile max (vec->scalar hop)
            pltpu.SMEM((1,), jnp.int32),    # hit-row index (two-stage search)
        ],
        compiler_params=pltpu.CompilerParams(
            dimension_semantics=("arbitrary",),
            vmem_limit_bytes=32 * 1024 * 1024),
    )(x2d)

    main_idx = idx2d[0, 0]
    if tail_len == 0:
        return main_idx

    # Fold the sub-128 tail in the wrapper (tiny); main indices precede tail
    # indices, so strict ">" keeps first-occurrence ties.
    main_max = max2d[0, 0]
    tail = flat[n_main:]
    tail_max = jnp.max(tail).astype(acc_dtype)
    tail_idx = (jnp.argmax(tail) + n_main).astype(jnp.int32)
    return jnp.where(tail_max > main_max, tail_idx, main_idx)


if __name__ == "__main__":
    key = jax.random.PRNGKey(0)
    keys = jax.random.split(key, 3)

    # 1) Shape consistent with the (NCHW-style) model input: single-tile path.
    x = jax.random.normal(keys[0], (2, 4, 16, 16), dtype=jnp.float32)
    idx = pallas_argmax(x)
    jax.block_until_ready(idx)
    ref = jnp.argmax(x.reshape(-1)).astype(jnp.int32)
    assert int(idx) == int(ref), (int(idx), int(ref))

    # 2) Multi-tile streaming path + partial last tile + sub-128 tail.
    x2 = jax.random.normal(keys[1], (2440,), dtype=jnp.float32)
    idx2 = pallas_argmax(x2, max_tile_rows=8)
    jax.block_until_ready(idx2)
    ref2 = jnp.argmax(x2).astype(jnp.int32)
    assert int(idx2) == int(ref2), (int(idx2), int(ref2))

    # 3) bf16 input exercising the packed-dtype (16,128) tile rounding.
    x3 = jax.random.normal(keys[2], (48, 128), dtype=jnp.bfloat16)
    idx3 = pallas_argmax(x3, max_tile_rows=20)
    jax.block_until_ready(idx3)
    ref3 = jnp.argmax(x3.reshape(-1)).astype(jnp.int32)
    assert int(idx3) == int(ref3), (int(idx3), int(ref3))

    # 4) Tiny ragged input (<128 elements): wrapper-only path.
    x4 = jax.random.normal(keys[0], (3, 5, 7), dtype=jnp.float32)
    idx4 = pallas_argmax(x4)
    jax.block_until_ready(idx4)
    ref4 = jnp.argmax(x4.reshape(-1)).astype(jnp.int32)
    assert int(idx4) == int(ref4), (int(idx4), int(ref4))

    print("KERNEL_OK")
</pallas_src>

<mosaic_0001>
module attributes {stable_mosaic.version = 11 : i64} {
  func.func @_argmax_kernel(%arg0: i32, %arg1: memref<16x128xf32, #tpu.memory_space<vmem>>, %arg2: memref<1x1xi32, #tpu.memory_space<smem>>, %arg3: memref<1x1xf32, #tpu.memory_space<smem>>, %arg4: memref<1xf32, #tpu.memory_space<smem>>, %arg5: memref<1xi32, #tpu.memory_space<smem>>, %arg6: memref<1xf32, #tpu.memory_space<smem>>, %arg7: memref<1xi32, #tpu.memory_space<smem>>) attributes {dimension_semantics = [#tpu.dimension_semantics<arbitrary>], iteration_bounds = array<i64: 1>, scalar_prefetch = 0 : i64, scratch_operands = 4 : i64, tpu.core_type = #tpu.core_type<tc>, window_params = [{transform_indices = @transform_0, window_bounds = array<i64: 16, 128>}, {transform_indices = @transform_1, window_bounds = array<i64: 1, 1>}, {transform_indices = @transform_2, window_bounds = array<i64: 1, 1>}]} {
    %c0_i32 = arith.constant 0 : i32
    %0 = arith.cmpi eq, %arg0, %c0_i32 : i32
    %1 = arith.extui %0 : i1 to i32
    %c0_i32_0 = arith.constant 0 : i32
    %2 = arith.cmpi ne, %1, %c0_i32_0 : i32
    scf.if %2 {
      %cst_8 = arith.constant 0xFF800000 : f32
      %c0_9 = arith.constant 0 : index
      %17 = memref.load %arg4[%c0_9] : memref<1xf32, #tpu.memory_space<smem>>
      memref.store %cst_8, %arg4[%c0_9] : memref<1xf32, #tpu.memory_space<smem>>
      %c0_i32_10 = arith.constant 0 : i32
      %c0_11 = arith.constant 0 : index
      %18 = memref.load %arg5[%c0_11] : memref<1xi32, #tpu.memory_space<smem>>
      memref.store %c0_i32_10, %arg5[%c0_11] : memref<1xi32, #tpu.memory_space<smem>>
    } else {
    }
    %c0 = arith.constant 0 : index
    %c0_1 = arith.constant 0 : index
    %3 = vector.load %arg1[%c0, %c0_1] : memref<16x128xf32, #tpu.memory_space<vmem>>, vector<16x128xf32>
    %4 = vector.shape_cast %3 : vector<16x128xf32> to vector<1x16x128xf32>
    %cst = arith.constant dense<0xFF800000> : vector<1xf32>
    %5 = vector.multi_reduction <maximumf>, %4, %cst [1, 2] : vector<1x16x128xf32> to vector<1xf32>
    %6 = vector.shape_cast %5 : vector<1xf32> to vector<1x1x1xf32>
    %7 = vector.extract %6[0, 0, 0] : f32 from vector<1x1x1xf32>
    %c0_2 = arith.constant 0 : index
    %8 = memref.load %arg6[%c0_2] : memref<1xf32, #tpu.memory_space<smem>>
    memref.store %7, %arg6[%c0_2] : memref<1xf32, #tpu.memory_space<smem>>
    %c0_3 = arith.constant 0 : index
    %9 = memref.load %arg6[%c0_3] : memref<1xf32, #tpu.memory_space<smem>>
    %c0_4 = arith.constant 0 : index
    %10 = memref.load %arg4[%c0_4] : memref<1xf32, #tpu.memory_space<smem>>
    %11 = arith.cmpf ogt, %9, %10 : f32
    %12 = arith.extui %11 : i1 to i32
    %c2147483647_i32 = arith.constant 2147483647 : i32
    %c0_i32_5 = arith.constant 0 : i32
    %13 = arith.cmpi ne, %12, %c0_i32_5 : i32
    scf.if %13 {
      %c0_8 = arith.constant 0 : index
      %17 = memref.load %arg6[%c0_8] : memref<1xf32, #tpu.memory_space<smem>>
      %c0_9 = arith.constant 0 : index
      %18 = memref.load %arg4[%c0_9] : memref<1xf32, #tpu.memory_space<smem>>
      memref.store %17, %arg4[%c0_9] : memref<1xf32, #tpu.memory_space<smem>>
      %c0_10 = arith.constant 0 : index
      %19 = memref.load %arg6[%c0_10] : memref<1xf32, #tpu.memory_space<smem>>
      %c0_11 = arith.constant 0 : index
      %c0_12 = arith.constant 0 : index
      %20 = vector.load %arg1[%c0_11, %c0_12] : memref<16x128xf32, #tpu.memory_space<vmem>>, vector<16x128xf32>
      %cst_13 = arith.constant dense<0xFF800000> : vector<16xf32>
      %21 = vector.multi_reduction <maximumf>, %20, %cst_13 [1] : vector<16x128xf32> to vector<16xf32>
      %22 = vector.shape_cast %21 : vector<16xf32> to vector<16x1xf32>
      %23 = tpu.iota {dimensions = array<i32: 0>} : vector<16x1xi32>
      %24 = vector.broadcast %19 : f32 to vector<16x1xf32>
      %25 = arith.cmpf oeq, %22, %24 : vector<16x1xf32>
      %26 = vector.broadcast %c2147483647_i32 : i32 to vector<16x1xi32>
      %27 = arith.select %25, %23, %26 : vector<16x1xi1>, vector<16x1xi32>
      %28 = vector.shape_cast %27 : vector<16x1xi32> to vector<1x16x1xi32>
      %cst_14 = arith.constant dense<2147483647> : vector<1xi32>
      %29 = vector.multi_reduction <minsi>, %28, %cst_14 [1, 2] : vector<1x16x1xi32> to vector<1xi32>
      %30 = vector.shape_cast %29 : vector<1xi32> to vector<1x1x1xi32>
      %31 = vector.extract %30[0, 0, 0] : i32 from vector<1x1x1xi32>
      %c0_15 = arith.constant 0 : index
      %32 = memref.load %arg7[%c0_15] : memref<1xi32, #tpu.memory_space<smem>>
      memref.store %31, %arg7[%c0_15] : memref<1xi32, #tpu.memory_space<smem>>
      %c0_16 = arith.constant 0 : index
      %33 = memref.load %arg7[%c0_16] : memref<1xi32, #tpu.memory_space<smem>>
      %34 = arith.index_cast %33 : i32 to index
      %c0_17 = arith.constant 0 : index
      %35 = vector.load %arg1[%34, %c0_17] : memref<16x128xf32, #tpu.memory_space<vmem>>, vector<1x128xf32>
      %36 = tpu.iota {dimensions = array<i32: 1>} : vector<1x128xi32>
      %c2048_i32 = arith.constant 2048 : i32
      %37 = arith.muli %arg0, %c2048_i32 : i32
      %c128_i32 = arith.constant 128 : i32
      %38 = arith.muli %33, %c128_i32 : i32
      %39 = arith.addi %37, %38 : i32
      %40 = vector.broadcast %19 : f32 to vector<1x128xf32>
      %41 = arith.cmpf oeq, %35, %40 : vector<1x128xf32>
      %42 = vector.broadcast %39 : i32 to vector<1x128xi32>
      %43 = arith.addi %36, %42 : vector<1x128xi32>
      %44 = vector.broadcast %c2147483647_i32 : i32 to vector<1x128xi32>
      %45 = arith.select %41, %43, %44 : vector<1x128xi1>, vector<1x128xi32>
      %46 = vector.shape_cast %45 : vector<1x128xi32> to vector<1x1x128xi32>
      %cst_18 = arith.constant dense<2147483647> : vector<1xi32>
      %47 = vector.multi_reduction <minsi>, %46, %cst_18 [1, 2] : vector<1x1x128xi32> to vector<1xi32>
      %48 = vector.shape_cast %47 : vector<1xi32> to vector<1x1x1xi32>
      %49 = vector.extract %48[0, 0, 0] : i32 from vector<1x1x1xi32>
      %c0_19 = arith.constant 0 : index
      %50 = memref.load %arg5[%c0_19] : memref<1xi32, #tpu.memory_space<smem>>
      memref.store %49, %arg5[%c0_19] : memref<1xi32, #tpu.memory_space<smem>>
    } else {
    }
    %c0_i32_6 = arith.constant 0 : i32
    %14 = arith.cmpi eq, %arg0, %c0_i32_6 : i32
    %15 = arith.extui %14 : i1 to i32
    %c0_i32_7 = arith.constant 0 : i32
    %16 = arith.cmpi ne, %15, %c0_i32_7 : i32
    scf.if %16 {
      %c0_8 = arith.constant 0 : index
      %17 = memref.load %arg5[%c0_8] : memref<1xi32, #tpu.memory_space<smem>>
      %c0_9 = arith.constant 0 : index
      %c0_10 = arith.constant 0 : index
      %18 = memref.load %arg2[%c0_9, %c0_10] : memref<1x1xi32, #tpu.memory_space<smem>>
      memref.store %17, %arg2[%c0_9, %c0_10] : memref<1x1xi32, #tpu.memory_space<smem>>
      %c0_11 = arith.constant 0 : index
      %19 = memref.load %arg4[%c0_11] : memref<1xf32, #tpu.memory_space<smem>>
      %c0_12 = arith.constant 0 : index
      %c0_13 = arith.constant 0 : index
      %20 = memref.load %arg3[%c0_12, %c0_13] : memref<1x1xf32, #tpu.memory_space<smem>>
      memref.store %19, %arg3[%c0_12, %c0_13] : memref<1x1xf32, #tpu.memory_space<smem>>
    } else {
    }
    return
  }
  func.func @transform_0(%arg0: i32) -> (i32, i32) {
    %c0_i32 = arith.constant 0 : i32
    %c0_i32_0 = arith.constant 0 : i32
    return %arg0, %c0_i32 : i32, i32
  }
  func.func @transform_1(%arg0: i32) -> (i32, i32) {
    %c0_i32 = arith.constant 0 : i32
    %c0_i32_0 = arith.constant 0 : i32
    %c0_i32_1 = arith.constant 0 : i32
    return %c0_i32, %c0_i32_0 : i32, i32
  }
  func.func @transform_2(%arg0: i32) -> (i32, i32) {
    %c0_i32 = arith.constant 0 : i32
    %c0_i32_0 = arith.constant 0 : i32
    %c0_i32_1 = arith.constant 0 : i32
    return %c0_i32, %c0_i32_0 : i32, i32
  }
}

</mosaic_0001>

<llo_original>
// kernel: tpu_custom_call.1
$region0: #{tpu_custom_call.1}
  #allocation0 [shape = 'u32[]', space=smem, size = 0x4, offset = 0x4, fixed_abs, tag = 'smem constant byte address 0x4 - core index']
  #allocation1 [shape = 'u32[72,128]{1,0:T(1,128)}', space=vmem, size = 0x9000, scoped, tag = 'internal scratch']
  #allocation2 [shape = 'f32[1]{0:T(128)}', space=smem, size = 0x200, scoped, tag = 'scratch operand']
  #allocation3 [shape = 's32[1]{0:T(128)}', space=smem, size = 0x200, scoped, tag = 'scratch operand']
  #allocation4 [shape = 'f32[1]{0:T(128)}', space=smem, size = 0x200, scoped, tag = 'scratch operand']
  #allocation5 [shape = 's32[1]{0:T(128)}', space=smem, size = 0x200, scoped, tag = 'scratch operand']
  %s0 = inlined_call_operand.hbm [shape: f32[16,128], index: 0, kind: input, shape index: {}]
  %s1 = inlined_call_operand.hbm [shape: s32[1,1], index: 1, kind: output, shape index: {0}]
  %s2 = inlined_call_operand.hbm [shape: f32[1,1], index: 2, kind: output, shape index: {1}]
  %3 = xla_tuple %s1, %s2
  %s4 = sld [smem:[#allocation0]]
  $region38: #{tpu_custom_call.1} parent=0
    _
  %s6 = ssub.s32 1, %s4
  %s7 = scalar_select 0, %s6, %s4
  $region1: #{tpu_custom_call.1} parent=0
    #allocation6 [shape = 'u8[8192]{0}', space=vmem, size = 0x2000, scoped, tag = 'input window, operand 0, single buffered']
    #allocation7 [shape = 's32[1]{0}', space=sflag, size = 0x4, scoped, tag = 'scoped memory for tpu_custom_call.1']
    #allocation8 [shape = 's32[1]{0}', space=sflag, size = 0x4, scoped, tag = 'scoped memory for tpu_custom_call.1']
    #allocation9 [shape = 'u8[512]{0}', space=smem, size = 0x200, scoped, tag = 'output window, operand 0, single buffered']
    #allocation10 [shape = 'u8[512]{0}', space=smem, size = 0x200, scoped, tag = 'output window, operand 1, single buffered']
    #allocation11 [shape = 's32[1]{0}', space=sflag, size = 0x4, scoped, tag = 'scoped memory for tpu_custom_call.1']
    %8 = vsyncpa [#allocation7], 0
    %9 = vsyncpa [#allocation8], 0
    %10 = vsyncpa [#allocation11], 0
    // Predicated region
    $region2: #{tpu_custom_call.1} parent=1 // pred_check
      _
    $region3: #{tpu_custom_call.1} parent=1 // pred_check_branch
      %12 = sbr.rel (0) target = $region5
    $region4: #{tpu_custom_call.1} parent=1 // pred_region
      %14 = vsyncadd [#allocation7], 0
      %s15 = sshll.u32 %s0, 4
      %s16 = int_to_ptr.hbm [resolvable:$true] %s15
      %s17 = sshll.u32 [#allocation6], 4
      %s18 = int_to_ptr.vmem [resolvable:$true] %s17
      %23 = dma.hbm_to_vmem [thread:$0]  %s16, 256, %s18, [#allocation7], 128, 128, 8
    $region5: #{tpu_custom_call.1} parent=1 // pred_fallthru
      _
    // Predicated region
    $region6: #{tpu_custom_call.1} parent=1 // pred_check
      _
    $region7: #{tpu_custom_call.1} parent=1 // pred_check_branch
      %25 = sbr.rel (0) target = $region9
    $region8: #{tpu_custom_call.1} parent=1 // pred_region
      %27 = dma.done [#allocation7], 256
    $region9: #{tpu_custom_call.1} parent=1 // pred_fallthru
      _
    %p28 = scmp.eq.s32.totalorder 0, 0
    // Predicated region
    $region10: #{tpu_custom_call.1} parent=1 // pred_check
      %p29 = pneg %p28
    $region11: #{tpu_custom_call.1} parent=1 // pred_check_branch
      %31 = sbr.rel (%p29) target = $region13
    $region12: #{tpu_custom_call.1} parent=1 // pred_region
      %s32 = scalar_lea.smem [#allocation2], 0
      %33 = sst [smem:[%s32]] -inf
      %s34 = scalar_lea.smem [#allocation3], 0
      %35 = sst [smem:[%s34]] 0
    $region13: #{tpu_custom_call.1} parent=1 // pred_fallthru
      _
    %v36 = vld [vmem:[#allocation6] sm:$0xff]
    %v37 = vld [vmem:[#allocation6 + $0x8] sm:$0xff]
    %v38 = vmax.f32 %v36, %v37
    %39 = vmax.xlane.f32.xlu0 %v38
    %v40 = vpop.xlane.xlu0 %39
    %v41 = vrot.slane %v40, 4
    %v42 = vmax.f32 %v40, %v41
    %v43 = vrot.slane %v42, 2
    %v44 = vmax.f32 %v42, %v43
    %v45 = vrot.slane %v44, 1
    %v46 = vmax.f32 %v44, %v45
    %s47 = vtos %v46
    %s48 = scalar_lea.smem [#allocation4], 0
    %49 = sst [smem:[%s48]] %s47
    %s50 = sld [smem:[#allocation4]]
    %s51 = sld [smem:[#allocation2]]
    %p52 = scmp.gt.f32.partialorder %s50, %s51
    // Predicated region
    $region14: #{tpu_custom_call.1} parent=1 // pred_check
      %p53 = pneg %p52
    $region15: #{tpu_custom_call.1} parent=1 // pred_check_branch
      %55 = sbr.rel (%p53) target = $region17
    $region16: #{tpu_custom_call.1} parent=1 // pred_region
      %s56 = sld [smem:[#allocation4]]
      %s57 = scalar_lea.smem [#allocation2], 0
      %58 = sst [smem:[%s57]] %s56
      %s59 = sld [smem:[#allocation4]]
      %v60 = vld [vmem:[#allocation6] sm:$0xff]
      %v61 = vld [vmem:[#allocation6 + $0x8] sm:$0xff]
      %62 = vmax.xlane.f32.xlu0 %v60
      %v63 = vpop.xlane.xlu0 %62
      %64 = vmax.xlane.f32.xlu0 %v61
      %v65 = vpop.xlane.xlu0 %64
      %v66 = vlaneseq
      %v67 = vshrl.u32 %v66, 7
      %v68 = vadd.s32 %v67, 8
      %v69 = vstv %s59
      %vm70 = vcmp.eq.f32.partialorder %v63, %v69
      %vm71 = vcmp.eq.f32.partialorder %v65, %v69
      %v72 = vsel %vm70, %v67, 2147483647
      %v73 = vsel %vm71, %v68, 2147483647
      %vm74 = vcmp.lt.s32.totalorder %v72, %v73
      %v75 = vsel %vm74, %v72, %v73
      %v76 = vrot.slane %v75, 4
      %vm77 = vcmp.lt.s32.totalorder %v75, %v76
      %v78 = vsel %vm77, %v75, %v76
      %v79 = vrot.slane %v78, 2
      %vm80 = vcmp.lt.s32.totalorder %v78, %v79
      %v81 = vsel %vm80, %v78, %v79
      %v82 = vrot.slane %v81, 1
      %vm83 = vcmp.lt.s32.totalorder %v81, %v82
      %v84 = vsel %vm83, %v81, %v82
      %s85 = vtos %v84
      %s86 = scalar_lea.smem [#allocation5], 0
      %87 = sst [smem:[%s86]] %s85
      %s88 = sld [smem:[#allocation5]]
      %s89 = scalar_lea.vmem [#allocation6], %s88
      %v90 = vld [vmem:[%s89] sm:$0x1]
      %v91 = vlaneseq
      %v92 = vand.u32 %v91, 127
      %s93 = smul.u32 0, 2048
      %s94 = smul.u32 %s88, 128
      %s95 = sadd.s32 %s93, %s94
      %vm96 = vcmp.eq.f32.partialorder %v90, %v69
      %v97 = vstv %s95
      %v98 = vadd.s32 %v92, %v97
      %v99 = vsel %vm96, %v98, 2147483647
      %vm100 = vcmask 1040384
      %v101 = vsel %vm100, %v99, 2147483647
      %v102 = vand.u32 %v101, 65535
      %v103 = vshra.s32 %v101, 16
      %v104 = vcvt.s32.f32 %v102
      %v105 = vcvt.s32.f32 %v103
      %106 = vmin.xlane.f32.xlu0 %v105
      %v107 = vpop.xlane.xlu0 %106
      %vm108 = vcmp.eq.f32.partialorder %v105, %v107
      %v109 = vsel %vm108, %v104, inf
      %110 = vmin.xlane.f32.xlu0 %v109
      %v111 = vpop.xlane.xlu0 %110
      %v112 = vcvt.f32.s32 %v111
      %v113 = vcvt.f32.s32 %v107
      %v114 = vshll.u32 %v113, 16
      %v115 = vadd.s32 %v114, %v112
      %v116 = vrot.slane %v115, 4
      %vm117 = vcmp.lt.s32.totalorder %v115, %v116
      %v118 = vsel %vm117, %v115, %v116
      %v119 = vrot.slane %v118, 2
      %vm120 = vcmp.lt.s32.totalorder %v118, %v119
      %v121 = vsel %vm120, %v118, %v119
      %v122 = vrot.slane %v121, 1
      %vm123 = vcmp.lt.s32.totalorder %v121, %v122
      %v124 = vsel %vm123, %v121, %v122
      %s125 = vtos %v124
      %s126 = scalar_lea.smem [#allocation3], 0
      %127 = sst [smem:[%s126]] %s125
    $region17: #{tpu_custom_call.1} parent=1 // pred_fallthru
      _
    // Predicated region
    $region18: #{tpu_custom_call.1} parent=1 // pred_check
      %p128 = pneg %p28
    $region19: #{tpu_custom_call.1} parent=1 // pred_check_branch
      %130 = sbr.rel (%p128) target = $region21
    $region20: #{tpu_custom_call.1} parent=1 // pred_region
      %s131 = sld [smem:[#allocation3]]
      %s132 = scalar_lea.smem [#allocation9], 0
      %133 = sst [smem:[%s132]] %s131
      %s134 = sld [smem:[#allocation2]]
      %s135 = scalar_lea.smem [#allocation10], 0
      %136 = sst [smem:[%s135]] %s134
    $region21: #{tpu_custom_call.1} parent=1 // pred_fallthru
      _
    // Predicated region
    $region22: #{tpu_custom_call.1} parent=1 // pred_check
      _
    $region23: #{tpu_custom_call.1} parent=1 // pred_check_branch
      %138 = sbr.rel (0) target = $region25
    $region24: #{tpu_custom_call.1} parent=1 // pred_region
      %140 = vsyncadd [#allocation8], 0
      %s142 = sshll.u32 %s1, 4
      %s143 = int_to_ptr.hbm [resolvable:$true] %s142
      %145 = dma.smem_to_hbm [#allocation9], 16, %s143, [#allocation8]
    $region25: #{tpu_custom_call.1} parent=1 // pred_fallthru
      _
    // Predicated region
    $region26: #{tpu_custom_call.1} parent=1 // pred_check
      _
    $region27: #{tpu_custom_call.1} parent=1 // pred_check_branch
      %147 = sbr.rel (0) target = $region29
    $region28: #{tpu_custom_call.1} parent=1 // pred_region
      %149 = vsyncadd [#allocation11], 0
      %s151 = sshll.u32 %s2, 4
      %s152 = int_to_ptr.hbm [resolvable:$true] %s151
      %154 = dma.smem_to_hbm [#allocation10], 16, %s152, [#allocation11]
    $region29: #{tpu_custom_call.1} parent=1 // pred_fallthru
      _
    // Predicated region
    $region30: #{tpu_custom_call.1} parent=1 // pred_check
      _
    $region31: #{tpu_custom_call.1} parent=1 // pred_check_branch
      %156 = sbr.rel (0) target = $region33
    $region32: #{tpu_custom_call.1} parent=1 // pred_region
      %158 = dma.done [#allocation8], 16
    $region33: #{tpu_custom_call.1} parent=1 // pred_fallthru
      _
    // Predicated region
    $region34: #{tpu_custom_call.1} parent=1 // pred_check
      _
    $region35: #{tpu_custom_call.1} parent=1 // pred_check_branch
      %160 = sbr.rel (0) target = $region37
    $region36: #{tpu_custom_call.1} parent=1 // pred_region
      %162 = dma.done [#allocation11], 16
    $region37: #{tpu_custom_call.1} parent=1 // pred_fallthru
      _
    %163 = sfence
    %164 = vsyncpa [#allocation7], 1
    %165 = vsyncpa [#allocation8], 1
    %166 = vsyncpa [#allocation11], 1

</llo_original>
